<compile_context>
chip_gen: v5e
topology: v5e:2x2
jax: 0.10.0
libtpu: 0.0.40
codegen_flags: <defaults>
</compile_context>

<pallas_src>
import jax
import jax.numpy as jnp
import numpy as np
from jax.experimental import pallas as pl
from jax.experimental.pallas import tpu as pltpu

# ---------------- model dims (small, deterministic) ----------------
B = 2          # batch
C_IN = 4       # input channels
H = W = 16     # spatial
K = 3          # conv kernel
C_FEAT = 32    # backbone feature channels
N_CLS = 10     # classification head width
N_LOGIC = 5    # logic head width
P = K * K * C_IN   # im2col patch length = 36
HW = H * W         # 256
BHW = B * HW       # 512
OUT_W = 128        # lane-dense output slab width (>= N_CLS + N_LOGIC + C_FEAT)

# Column layout of the output slab / fused head weight:
#   [0 : N_CLS)                      classification
#   [N_CLS : N_CLS+N_LOGIC)          logic
#   [N_CLS+N_LOGIC : +C_FEAT)        features (identity block, zero bias)
#   remainder                        zero padding
_CLS0, _LOG0, _FEA0 = 0, N_CLS, N_CLS + N_LOGIC


# ---------------------------- Pallas kernel ----------------------------
def _lsnet_kernel(patches_ref, conv_ref, pool_ref, heads_ref, out_ref):
    # Conv slab: rows [0:P) = weight, row P = bias.
    conv = conv_ref[...]                                   # [P+1, C_FEAT]
    w_conv, b_conv = conv[:P, :], conv[P:, :]

    # 3x3 conv as ONE patch-matmul over all batch elements, + bias, ReLU.
    fm = jnp.dot(patches_ref[...], w_conv,
                 preferred_element_type=jnp.float32) + b_conv   # [B*HW, C_FEAT]
    fm = jnp.maximum(fm, 0.0)

    # Global average pool for every batch element via a single MXU matmul:
    # pool_ref row b holds 1/HW over its own HW-slice of the B*HW axis.
    pooled = jnp.dot(pool_ref[...], fm,
                     preferred_element_type=jnp.float32)        # [B, C_FEAT]

    # Fused heads + feature passthrough: one matmul into a lane-dense slab.
    heads = heads_ref[...]                                 # [C_FEAT+1, OUT_W]
    w_heads, b_heads = heads[:C_FEAT, :], heads[C_FEAT:, :]
    out_ref[...] = jnp.dot(pooled, w_heads,
                           preferred_element_type=jnp.float32) + b_heads


# ---------------------------- glue (plain JAX) ----------------------------
def _im2col_nhwc(x_nhwc):
    """3x3 neighbourhoods with zero padding 1 -> [B*HW, K*K*C]."""
    xp = jnp.pad(x_nhwc, ((0, 0), (1, 1), (1, 1), (0, 0)))
    cols = [xp[:, i:i + H, j:j + W, :] for i in range(K) for j in range(K)]
    patches = jnp.stack(cols, axis=3)                      # [B, H, W, K*K, C]
    return patches.reshape(BHW, P)


def _pack_params(params):
    """Pack the 6 raw params into 2 slabs + the constant pooling matrix."""
    wconv, bconv, wc, bc, wl, bl = params

    conv_slab = jnp.concatenate([wconv, bconv], axis=0)    # [P+1, C_FEAT]

    heads_slab = jnp.zeros((C_FEAT + 1, OUT_W), jnp.float32)
    heads_slab = heads_slab.at[:C_FEAT, _CLS0:_CLS0 + N_CLS].set(wc)
    heads_slab = heads_slab.at[:C_FEAT, _LOG0:_LOG0 + N_LOGIC].set(wl)
    heads_slab = heads_slab.at[:C_FEAT, _FEA0:_FEA0 + C_FEAT].set(
        jnp.eye(C_FEAT, dtype=jnp.float32))
    heads_slab = heads_slab.at[C_FEAT, _CLS0:_CLS0 + N_CLS].set(bc[0])
    heads_slab = heads_slab.at[C_FEAT, _LOG0:_LOG0 + N_LOGIC].set(bl[0])

    pool_mat = jnp.repeat(jnp.eye(B, dtype=jnp.float32) / HW, HW, axis=1)  # [B, B*HW]
    return conv_slab, pool_mat, heads_slab


@jax.jit
def lsnet_forward(x_nchw, params):
    """Returns (classification [B, N_CLS], logic [B, N_LOGIC], features [B, C_FEAT])."""
    x_nhwc = jnp.transpose(x_nchw, (0, 2, 3, 1)).astype(jnp.float32)
    patches = _im2col_nhwc(x_nhwc)                         # [B*HW, P]
    conv_slab, pool_mat, heads_slab = _pack_params(params)

    vmem = pl.BlockSpec(memory_space=pltpu.MemorySpace.VMEM)
    out = pl.pallas_call(
        _lsnet_kernel,
        out_shape=jax.ShapeDtypeStruct((B, OUT_W), jnp.float32),
        in_specs=[vmem, vmem, vmem, vmem],
        out_specs=vmem,
    )(patches, conv_slab, pool_mat, heads_slab)

    cls = out[:, _CLS0:_CLS0 + N_CLS]
    logic = out[:, _LOG0:_LOG0 + N_LOGIC]
    feat = out[:, _FEA0:_FEA0 + C_FEAT]
    return cls, logic, feat


# ---------------------------- reference (pure JAX) ----------------------------
def lsnet_reference(x_nchw, params):
    wconv, bconv, wc, bc, wl, bl = params
    x_nhwc = jnp.transpose(x_nchw, (0, 2, 3, 1)).astype(jnp.float32)
    patches = _im2col_nhwc(x_nhwc).reshape(B, HW, P)
    fm = jnp.maximum(patches @ wconv + bconv, 0.0)         # [B, HW, C_FEAT]
    pooled = jnp.mean(fm, axis=1)                          # [B, C_FEAT]
    return pooled @ wc + bc, pooled @ wl + bl, pooled


# ---------------------------- parameter init ----------------------------
def init_params(key):
    k = jax.random.split(key, 6)
    scale_conv = 1.0 / np.sqrt(P)
    scale_head = 1.0 / np.sqrt(C_FEAT)
    wconv = jax.random.normal(k[0], (P, C_FEAT), jnp.float32) * scale_conv
    bconv = jax.random.normal(k[1], (1, C_FEAT), jnp.float32) * 0.01
    wc = jax.random.normal(k[2], (C_FEAT, N_CLS), jnp.float32) * scale_head
    bc = jax.random.normal(k[3], (1, N_CLS), jnp.float32) * 0.01
    wl = jax.random.normal(k[4], (C_FEAT, N_LOGIC), jnp.float32) * scale_head
    bl = jax.random.normal(k[5], (1, N_LOGIC), jnp.float32) * 0.01
    return (wconv, bconv, wc, bc, wl, bl)


if __name__ == "__main__":
    key = jax.random.PRNGKey(0)
    kx, kp = jax.random.split(key)
    x = jax.random.normal(kx, (B, C_IN, H, W), jnp.float32)   # NCHW like PyTorch
    params = init_params(kp)

    cls, logic, feat = lsnet_forward(x, params)
    jax.block_until_ready((cls, logic, feat))

    cls_ref, logic_ref, feat_ref = lsnet_reference(x, params)
    np.testing.assert_allclose(np.asarray(cls), np.asarray(cls_ref), rtol=1e-5, atol=1e-5)
    np.testing.assert_allclose(np.asarray(logic), np.asarray(logic_ref), rtol=1e-5, atol=1e-5)
    np.testing.assert_allclose(np.asarray(feat), np.asarray(feat_ref), rtol=1e-5, atol=1e-5)

    print("KERNEL_OK")
</pallas_src>

<mosaic_0001>
module attributes {stable_mosaic.version = 11 : i64} {
  func.func @_lsnet_kernel(%arg0: memref<512x36xf32, #tpu.memory_space<vmem>>, %arg1: memref<37x32xf32, #tpu.memory_space<vmem>>, %arg2: memref<2x512xf32, #tpu.memory_space<vmem>>, %arg3: memref<33x128xf32, #tpu.memory_space<vmem>>, %arg4: memref<2x128xf32, #tpu.memory_space<vmem>>) attributes {dimension_semantics = [], scalar_prefetch = 0 : i64, scratch_operands = 0 : i64, tpu.core_type = #tpu.core_type<tc>} {
    %c0 = arith.constant 0 : index
    %c0_0 = arith.constant 0 : index
    %0 = vector.load %arg1[%c0, %c0_0] : memref<37x32xf32, #tpu.memory_space<vmem>>, vector<37x32xf32>
    %1 = vector.extract_strided_slice %0 {offsets = [0, 0], sizes = [36, 32], strides = [1, 1]} : vector<37x32xf32> to vector<36x32xf32>
    %2 = vector.extract_strided_slice %0 {offsets = [36, 0], sizes = [1, 32], strides = [1, 1]} : vector<37x32xf32> to vector<1x32xf32>
    %c0_1 = arith.constant 0 : index
    %c0_2 = arith.constant 0 : index
    %3 = vector.load %arg0[%c0_1, %c0_2] : memref<512x36xf32, #tpu.memory_space<vmem>>, vector<512x36xf32>
    %cst = arith.constant dense<0.000000e+00> : vector<512x32xf32>
    %4 = tpu.matmul %3, %1, %cst {dimension_numbers = #tpu.dot_dimension_numbers<[1], [0], [0], [1], [0, 0, 1, 1], [], []>} : vector<512x36xf32>, vector<36x32xf32>, vector<512x32xf32> -> vector<512x32xf32>
    %5 = vector.broadcast %2 : vector<1x32xf32> to vector<512x32xf32>
    %6 = arith.addf %4, %5 : vector<512x32xf32>
    %cst_3 = arith.constant 0.000000e+00 : f32
    %7 = vector.broadcast %cst_3 : f32 to vector<512x32xf32>
    %8 = arith.maximumf %6, %7 : vector<512x32xf32>
    %c0_4 = arith.constant 0 : index
    %c0_5 = arith.constant 0 : index
    %9 = vector.load %arg2[%c0_4, %c0_5] : memref<2x512xf32, #tpu.memory_space<vmem>>, vector<2x512xf32>
    %cst_6 = arith.constant dense<0.000000e+00> : vector<2x32xf32>
    %10 = tpu.matmul %9, %8, %cst_6 {dimension_numbers = #tpu.dot_dimension_numbers<[1], [0], [0], [1], [0, 0, 1, 1], [], []>} : vector<2x512xf32>, vector<512x32xf32>, vector<2x32xf32> -> vector<2x32xf32>
    %c0_7 = arith.constant 0 : index
    %c0_8 = arith.constant 0 : index
    %11 = vector.load %arg3[%c0_7, %c0_8] : memref<33x128xf32, #tpu.memory_space<vmem>>, vector<33x128xf32>
    %12 = vector.extract_strided_slice %11 {offsets = [0, 0], sizes = [32, 128], strides = [1, 1]} : vector<33x128xf32> to vector<32x128xf32>
    %13 = vector.extract_strided_slice %11 {offsets = [32, 0], sizes = [1, 128], strides = [1, 1]} : vector<33x128xf32> to vector<1x128xf32>
    %cst_9 = arith.constant dense<0.000000e+00> : vector<2x128xf32>
    %14 = tpu.matmul %10, %12, %cst_9 {dimension_numbers = #tpu.dot_dimension_numbers<[1], [0], [0], [1], [0, 0, 1, 1], [], []>} : vector<2x32xf32>, vector<32x128xf32>, vector<2x128xf32> -> vector<2x128xf32>
    %15 = vector.broadcast %13 : vector<1x128xf32> to vector<2x128xf32>
    %16 = arith.addf %14, %15 : vector<2x128xf32>
    %c0_10 = arith.constant 0 : index
    %c0_11 = arith.constant 0 : index
    %17 = vector.load %arg4[%c0_10, %c0_11] : memref<2x128xf32, #tpu.memory_space<vmem>>, vector<2x128xf32>
    tpu.vector_store %arg4[%c0_10, %c0_11], %16 {strides = array<i32>} : memref<2x128xf32, #tpu.memory_space<vmem>>, vector<2x128xf32>,
    return
  }
}

</mosaic_0001>

<llo_original>
// kernel: lsnet_forward.1
$region0: #{lsnet_forward.1}
  #allocation0 [shape = 'u32[]', space=smem, size = 0x4, offset = 0x4, fixed_abs, tag = 'smem constant byte address 0x4 - core index']
  #allocation1 [shape = 'u32[72,128]{1,0:T(1,128)}', space=vmem, size = 0x9000, scoped, tag = 'internal scratch']
  %s0 = inlined_call_operand.vmem [shape: f32[512,36], index: 0, kind: input, shape index: {}]
  %s1 = inlined_call_operand.vmem [shape: f32[37,32], index: 1, kind: input, shape index: {}]
  %s2 = inlined_call_operand.vmem [shape: f32[2,512], index: 2, kind: input, shape index: {}]
  %s3 = inlined_call_operand.vmem [shape: f32[33,128], index: 3, kind: input, shape index: {}]
  %s4 = inlined_call_operand.vmem [shape: f32[2,128], index: 4, kind: output, shape index: {}]
  %s5 = sld [smem:[#allocation0]]
  $region26: #{lsnet_forward.1} parent=0
    _
  %s7 = ssub.s32 1, %s5
  %s8 = scalar_select 0, %s7, %s5
  // Predicated region
  $region2: #{lsnet_forward.1} parent=0 // pred_check
    _
  $region3: #{lsnet_forward.1} parent=0 // pred_check_branch
    %10 = sbr.rel (0) target = $region5
  $region4: #{lsnet_forward.1} parent=0 // pred_region
    _
  $region5: #{lsnet_forward.1} parent=0 // pred_fallthru
    _
  // Predicated region
  $region6: #{lsnet_forward.1} parent=0 // pred_check
    _
  $region7: #{lsnet_forward.1} parent=0 // pred_check_branch
    %12 = sbr.rel (0) target = $region9
  $region8: #{lsnet_forward.1} parent=0 // pred_region
    _
  $region9: #{lsnet_forward.1} parent=0 // pred_fallthru
    _
  // Predicated region
  $region10: #{lsnet_forward.1} parent=0 // pred_check
    _
  $region11: #{lsnet_forward.1} parent=0 // pred_check_branch
    %14 = sbr.rel (0) target = $region13
  $region12: #{lsnet_forward.1} parent=0 // pred_region
    _
  $region13: #{lsnet_forward.1} parent=0 // pred_fallthru
    _
  // Predicated region
  $region14: #{lsnet_forward.1} parent=0 // pred_check
    _
  $region15: #{lsnet_forward.1} parent=0 // pred_check_branch
    %16 = sbr.rel (0) target = $region17
  $region16: #{lsnet_forward.1} parent=0 // pred_region
    _
  $region17: #{lsnet_forward.1} parent=0 // pred_fallthru
    _
  %v17 = vld [vmem:[%s1] sm:$0xff]
  %v18 = vld [vmem:[%s1 + $0x8] sm:$0xff]
  %v19 = vld [vmem:[%s1 + $0x10] sm:$0xff]
  %v20 = vld [vmem:[%s1 + $0x18] sm:$0xff]
  %v21 = vld [vmem:[%s1 + $0x20] sm:$0x1f]
  %v22 = vld [vmem:[%s0] sm:$0xff]
  %v23 = vld [vmem:[%s0 + $0x8] sm:$0xff]
  %v24 = vld [vmem:[%s0 + $0x10] sm:$0xff]
  %v25 = vld [vmem:[%s0 + $0x18] sm:$0xff]
  %v26 = vld [vmem:[%s0 + $0x20] sm:$0xff]
  %v27 = vld [vmem:[%s0 + $0x28] sm:$0xff]
  %v28 = vld [vmem:[%s0 + $0x30] sm:$0xff]
  %v29 = vld [vmem:[%s0 + $0x38] sm:$0xff]
  %v30 = vld [vmem:[%s0 + $0x40] sm:$0xff]
  %v31 = vld [vmem:[%s0 + $0x48] sm:$0xff]
  %v32 = vld [vmem:[%s0 + $0x50] sm:$0xff]
  %v33 = vld [vmem:[%s0 + $0x58] sm:$0xff]
  %v34 = vld [vmem:[%s0 + $0x60] sm:$0xff]
  %v35 = vld [vmem:[%s0 + $0x68] sm:$0xff]
  %v36 = vld [vmem:[%s0 + $0x70] sm:$0xff]
  %v37 = vld [vmem:[%s0 + $0x78] sm:$0xff]
  %v38 = vld [vmem:[%s0 + $0x80] sm:$0xff]
  %v39 = vld [vmem:[%s0 + $0x88] sm:$0xff]
  %v40 = vld [vmem:[%s0 + $0x90] sm:$0xff]
  %v41 = vld [vmem:[%s0 + $0x98] sm:$0xff]
  %v42 = vld [vmem:[%s0 + $0xa0] sm:$0xff]
  %v43 = vld [vmem:[%s0 + $0xa8] sm:$0xff]
  %v44 = vld [vmem:[%s0 + $0xb0] sm:$0xff]
  %v45 = vld [vmem:[%s0 + $0xb8] sm:$0xff]
  %v46 = vld [vmem:[%s0 + $0xc0] sm:$0xff]
  %v47 = vld [vmem:[%s0 + $0xc8] sm:$0xff]
  %v48 = vld [vmem:[%s0 + $0xd0] sm:$0xff]
  %v49 = vld [vmem:[%s0 + $0xd8] sm:$0xff]
  %v50 = vld [vmem:[%s0 + $0xe0] sm:$0xff]
  %v51 = vld [vmem:[%s0 + $0xe8] sm:$0xff]
  %v52 = vld [vmem:[%s0 + $0xf0] sm:$0xff]
  %v53 = vld [vmem:[%s0 + $0xf8] sm:$0xff]
  %v54 = vld [vmem:[%s0 + $0x100] sm:$0xff]
  %v55 = vld [vmem:[%s0 + $0x108] sm:$0xff]
  %v56 = vld [vmem:[%s0 + $0x110] sm:$0xff]
  %v57 = vld [vmem:[%s0 + $0x118] sm:$0xff]
  %v58 = vld [vmem:[%s0 + $0x120] sm:$0xff]
  %v59 = vld [vmem:[%s0 + $0x128] sm:$0xff]
  %v60 = vld [vmem:[%s0 + $0x130] sm:$0xff]
  %v61 = vld [vmem:[%s0 + $0x138] sm:$0xff]
  %v62 = vld [vmem:[%s0 + $0x140] sm:$0xff]
  %v63 = vld [vmem:[%s0 + $0x148] sm:$0xff]
  %v64 = vld [vmem:[%s0 + $0x150] sm:$0xff]
  %v65 = vld [vmem:[%s0 + $0x158] sm:$0xff]
  %v66 = vld [vmem:[%s0 + $0x160] sm:$0xff]
  %v67 = vld [vmem:[%s0 + $0x168] sm:$0xff]
  %v68 = vld [vmem:[%s0 + $0x170] sm:$0xff]
  %v69 = vld [vmem:[%s0 + $0x178] sm:$0xff]
  %v70 = vld [vmem:[%s0 + $0x180] sm:$0xff]
  %v71 = vld [vmem:[%s0 + $0x188] sm:$0xff]
  %v72 = vld [vmem:[%s0 + $0x190] sm:$0xff]
  %v73 = vld [vmem:[%s0 + $0x198] sm:$0xff]
  %v74 = vld [vmem:[%s0 + $0x1a0] sm:$0xff]
  %v75 = vld [vmem:[%s0 + $0x1a8] sm:$0xff]
  %v76 = vld [vmem:[%s0 + $0x1b0] sm:$0xff]
  %v77 = vld [vmem:[%s0 + $0x1b8] sm:$0xff]
  %v78 = vld [vmem:[%s0 + $0x1c0] sm:$0xff]
  %v79 = vld [vmem:[%s0 + $0x1c8] sm:$0xff]
  %v80 = vld [vmem:[%s0 + $0x1d0] sm:$0xff]
  %v81 = vld [vmem:[%s0 + $0x1d8] sm:$0xff]
  %v82 = vld [vmem:[%s0 + $0x1e0] sm:$0xff]
  %v83 = vld [vmem:[%s0 + $0x1e8] sm:$0xff]
  %v84 = vld [vmem:[%s0 + $0x1f0] sm:$0xff]
  %v85 = vld [vmem:[%s0 + $0x1f8] sm:$0xff]
  %v86 = vperm.slane %v21, 4
  %vm87 = vcmask 293888
  %v89 = vsel %vm87, %v22, 0
  %v92 = vsel %vm87, %v23, 0
  %v95 = vsel %vm87, %v24, 0
  %v98 = vsel %vm87, %v25, 0
  %v101 = vsel %vm87, %v26, 0
  %v104 = vsel %vm87, %v27, 0
  %v107 = vsel %vm87, %v28, 0
  %v110 = vsel %vm87, %v29, 0
  %v113 = vsel %vm87, %v30, 0
  %v116 = vsel %vm87, %v31, 0
  %v119 = vsel %vm87, %v32, 0
  %v122 = vsel %vm87, %v33, 0
  %v125 = vsel %vm87, %v34, 0
  %v128 = vsel %vm87, %v35, 0
  %v131 = vsel %vm87, %v36, 0
  %v134 = vsel %vm87, %v37, 0
  %v137 = vsel %vm87, %v38, 0
  %v140 = vsel %vm87, %v39, 0
  %v143 = vsel %vm87, %v40, 0
  %v146 = vsel %vm87, %v41, 0
  %v149 = vsel %vm87, %v42, 0
  %v152 = vsel %vm87, %v43, 0
  %v155 = vsel %vm87, %v44, 0
  %v158 = vsel %vm87, %v45, 0
  %v161 = vsel %vm87, %v46, 0
  %v164 = vsel %vm87, %v47, 0
  %v167 = vsel %vm87, %v48, 0
  %v170 = vsel %vm87, %v49, 0
  %v173 = vsel %vm87, %v50, 0
  %v176 = vsel %vm87, %v51, 0
  %v179 = vsel %vm87, %v52, 0
  %v182 = vsel %vm87, %v53, 0
  %v185 = vsel %vm87, %v54, 0
  %v188 = vsel %vm87, %v55, 0
  %v191 = vsel %vm87, %v56, 0
  %v194 = vsel %vm87, %v57, 0
  %v197 = vsel %vm87, %v58, 0
  %v200 = vsel %vm87, %v59, 0
  %v203 = vsel %vm87, %v60, 0
  %v206 = vsel %vm87, %v61, 0
  %v209 = vsel %vm87, %v62, 0
  %v212 = vsel %vm87, %v63, 0
  %v215 = vsel %vm87, %v64, 0
  %v218 = vsel %vm87, %v65, 0
  %v221 = vsel %vm87, %v66, 0
  %v224 = vsel %vm87, %v67, 0
  %v227 = vsel %vm87, %v68, 0
  %v230 = vsel %vm87, %v69, 0
  %v233 = vsel %vm87, %v70, 0
  %v236 = vsel %vm87, %v71, 0
  %v239 = vsel %vm87, %v72, 0
  %v242 = vsel %vm87, %v73, 0
  %v245 = vsel %vm87, %v74, 0
  %v248 = vsel %vm87, %v75, 0
  %v251 = vsel %vm87, %v76, 0
  %v254 = vsel %vm87, %v77, 0
  %v257 = vsel %vm87, %v78, 0
  %v260 = vsel %vm87, %v79, 0
  %v263 = vsel %vm87, %v80, 0
  %v266 = vsel %vm87, %v81, 0
  %v269 = vsel %vm87, %v82, 0
  %v272 = vsel %vm87, %v83, 0
  %v275 = vsel %vm87, %v84, 0
  %v278 = vsel %vm87, %v85, 0
  %vm280 = vcmask 1043456
  %v282 = vsel %vm280, %v21, 0
  %284 = vmatpush.msra.mxu0 0.0
  %285 = vmatpush.msra.mxu0 0.0
  %286 = vmatpush.msra.mxu0 0.0
  %287 = vmatpush.msra.mxu0 0.0
  %288 = vmatpush.msra.mxu0 0.0
  %289 = vmatpush.msra.mxu0 0.0
  %290 = vmatpush.msra.mxu0 0.0
  %291 = vmatpush.msra.mxu0 0.0
  %292 = vmatpush.msra.mxu0 0.0
  %293 = vmatpush.msra.mxu0 0.0
  %294 = vmatpush.msra.mxu0 0.0
  %295 = vmatpush.msra.mxu0 %v282
  %296 = vmatpush.msra.mxu0 %v20
  %297 = vmatpush.msra.mxu0 %v19
  %298 = vmatpush.msra.mxu0 %v18
  %299 = vmatpush.msra.mxu0 %v17
  %300 = vmatmul.f32.gmra.mxu0 %v89
  %v301 = vpop.f32.mrf.mxu0
  %v302 = vadd.f32 %v86, %v301
  %303 = vmatmul.f32.gmra.mxu0 %v92
  %v304 = vpop.f32.mrf.mxu0
  %v305 = vadd.f32 %v86, %v304
  %306 = vmatmul.f32.gmra.mxu0 %v95
  %v307 = vpop.f32.mrf.mxu0
  %v308 = vadd.f32 %v86, %v307
  %309 = vmatmul.f32.gmra.mxu0 %v98
  %v310 = vpop.f32.mrf.mxu0
  %v311 = vadd.f32 %v86, %v310
  %312 = vmatmul.f32.gmra.mxu0 %v101
  %v313 = vpop.f32.mrf.mxu0
  %v314 = vadd.f32 %v86, %v313
  %315 = vmatmul.f32.gmra.mxu0 %v104
  %v316 = vpop.f32.mrf.mxu0
  %v317 = vadd.f32 %v86, %v316
  %318 = vmatmul.f32.gmra.mxu0 %v107
  %v319 = vpop.f32.mrf.mxu0
  %v320 = vadd.f32 %v86, %v319
  %321 = vmatmul.f32.gmra.mxu0 %v110
  %v322 = vpop.f32.mrf.mxu0
  %v323 = vadd.f32 %v86, %v322
  %324 = vmatmul.f32.gmra.mxu0 %v113
  %v325 = vpop.f32.mrf.mxu0
  %v326 = vadd.f32 %v86, %v325
  %327 = vmatmul.f32.gmra.mxu0 %v116
  %v328 = vpop.f32.mrf.mxu0
  %v329 = vadd.f32 %v86, %v328
  %330 = vmatmul.f32.gmra.mxu0 %v119
  %v331 = vpop.f32.mrf.mxu0
  %v332 = vadd.f32 %v86, %v331
  %333 = vmatmul.f32.gmra.mxu0 %v122
  %v334 = vpop.f32.mrf.mxu0
  %v335 = vadd.f32 %v86, %v334
  %336 = vmatmul.f32.gmra.mxu0 %v125
  %v337 = vpop.f32.mrf.mxu0
  %v338 = vadd.f32 %v86, %v337
  %339 = vmatmul.f32.gmra.mxu0 %v128
  %v340 = vpop.f32.mrf.mxu0
  %v341 = vadd.f32 %v86, %v340
  %342 = vmatmul.f32.gmra.mxu0 %v131
  %v343 = vpop.f32.mrf.mxu0
  %v344 = vadd.f32 %v86, %v343
  %345 = vmatmul.f32.gmra.mxu0 %v134
  %v346 = vpop.f32.mrf.mxu0
  %v347 = vadd.f32 %v86, %v346
  %348 = vmatmul.f32.gmra.mxu0 %v137
  %v349 = vpop.f32.mrf.mxu0
  %v350 = vadd.f32 %v86, %v349
  %351 = vmatmul.f32.gmra.mxu0 %v140
  %v352 = vpop.f32.mrf.mxu0
  %v353 = vadd.f32 %v86, %v352
  %354 = vmatmul.f32.gmra.mxu0 %v143
  %v355 = vpop.f32.mrf.mxu0
  %v356 = vadd.f32 %v86, %v355
  %357 = vmatmul.f32.gmra.mxu0 %v146
  %v358 = vpop.f32.mrf.mxu0
  %v359 = vadd.f32 %v86, %v358
  %360 = vmatmul.f32.gmra.mxu0 %v149
  %v361 = vpop.f32.mrf.mxu0
  %v362 = vadd.f32 %v86, %v361
  %363 = vmatmul.f32.gmra.mxu0 %v152
  %v364 = vpop.f32.mrf.mxu0
  %v365 = vadd.f32 %v86, %v364
  %366 = vmatmul.f32.gmra.mxu0 %v155
  %v367 = vpop.f32.mrf.mxu0
  %v368 = vadd.f32 %v86, %v367
  %369 = vmatmul.f32.gmra.mxu0 %v158
  %v370 = vpop.f32.mrf.mxu0
  %v371 = vadd.f32 %v86, %v370
  %372 = vmatmul.f32.gmra.mxu0 %v161
  %v373 = vpop.f32.mrf.mxu0
  %v374 = vadd.f32 %v86, %v373
  %375 = vmatmul.f32.gmra.mxu0 %v164
  %v376 = vpop.f32.mrf.mxu0
  %v377 = vadd.f32 %v86, %v376
  %378 = vmatmul.f32.gmra.mxu0 %v167
  %v379 = vpop.f32.mrf.mxu0
  %v380 = vadd.f32 %v86, %v379
  %381 = vmatmul.f32.gmra.mxu0 %v170
  %v382 = vpop.f32.mrf.mxu0
  %v383 = vadd.f32 %v86, %v382
  %384 = vmatmul.f32.gmra.mxu0 %v173
  %v385 = vpop.f32.mrf.mxu0
  %v386 = vadd.f32 %v86, %v385
  %387 = vmatmul.f32.gmra.mxu0 %v176
  %v388 = vpop.f32.mrf.mxu0
  %v389 = vadd.f32 %v86, %v388
  %390 = vmatmul.f32.gmra.mxu0 %v179
  %v391 = vpop.f32.mrf.mxu0
  %v392 = vadd.f32 %v86, %v391
  %393 = vmatmul.f32.gmra.mxu0 %v182
  %v394 = vpop.f32.mrf.mxu0
  %v395 = vadd.f32 %v86, %v394
  %396 = vmatmul.f32.gmra.mxu0 %v185
  %v397 = vpop.f32.mrf.mxu0
  %v398 = vadd.f32 %v86, %v397
  %399 = vmatmul.f32.gmra.mxu0 %v188
  %v400 = vpop.f32.mrf.mxu0
  %v401 = vadd.f32 %v86, %v400
  %402 = vmatmul.f32.gmra.mxu0 %v191
  %v403 = vpop.f32.mrf.mxu0
  %v404 = vadd.f32 %v86, %v403
  %405 = vmatmul.f32.gmra.mxu0 %v194
  %v406 = vpop.f32.mrf.mxu0
  %v407 = vadd.f32 %v86, %v406
  %408 = vmatmul.f32.gmra.mxu0 %v197
  %v409 = vpop.f32.mrf.mxu0
  %v410 = vadd.f32 %v86, %v409
  %411 = vmatmul.f32.gmra.mxu0 %v200
  %v412 = vpop.f32.mrf.mxu0
  %v413 = vadd.f32 %v86, %v412
  %414 = vmatmul.f32.gmra.mxu0 %v203
  %v415 = vpop.f32.mrf.mxu0
  %v416 = vadd.f32 %v86, %v415
  %417 = vmatmul.f32.gmra.mxu0 %v206
  %v418 = vpop.f32.mrf.mxu0
  %v419 = vadd.f32 %v86, %v418
  %420 = vmatmul.f32.gmra.mxu0 %v209
  %v421 = vpop.f32.mrf.mxu0
  %v422 = vadd.f32 %v86, %v421
  %423 = vmatmul.f32.gmra.mxu0 %v212
  %v424 = vpop.f32.mrf.mxu0
  %v425 = vadd.f32 %v86, %v424
  %426 = vmatmul.f32.gmra.mxu0 %v215
  %v427 = vpop.f32.mrf.mxu0
  %v428 = vadd.f32 %v86, %v427
  %429 = vmatmul.f32.gmra.mxu0 %v218
  %v430 = vpop.f32.mrf.mxu0
  %v431 = vadd.f32 %v86, %v430
  %432 = vmatmul.f32.gmra.mxu0 %v221
  %v433 = vpop.f32.mrf.mxu0
  %v434 = vadd.f32 %v86, %v433
  %435 = vmatmul.f32.gmra.mxu0 %v224
  %v436 = vpop.f32.mrf.mxu0
  %v437 = vadd.f32 %v86, %v436
  %438 = vmatmul.f32.gmra.mxu0 %v227
  %v439 = vpop.f32.mrf.mxu0
  %v440 = vadd.f32 %v86, %v439
  %441 = vmatmul.f32.gmra.mxu0 %v230
  %v442 = vpop.f32.mrf.mxu0
  %v443 = vadd.f32 %v86, %v442
  %444 = vmatmul.f32.gmra.mxu0 %v233
  %v445 = vpop.f32.mrf.mxu0
  %v446 = vadd.f32 %v86, %v445
  %447 = vmatmul.f32.gmra.mxu0 %v236
  %v448 = vpop.f32.mrf.mxu0
  %v449 = vadd.f32 %v86, %v448
  %450 = vmatmul.f32.gmra.mxu0 %v239
  %v451 = vpop.f32.mrf.mxu0
  %v452 = vadd.f32 %v86, %v451
  %453 = vmatmul.f32.gmra.mxu0 %v242
  %v454 = vpop.f32.mrf.mxu0
  %v455 = vadd.f32 %v86, %v454
  %456 = vmatmul.f32.gmra.mxu0 %v245
  %v457 = vpop.f32.mrf.mxu0
  %v458 = vadd.f32 %v86, %v457
  %459 = vmatmul.f32.gmra.mxu0 %v248
  %v460 = vpop.f32.mrf.mxu0
  %v461 = vadd.f32 %v86, %v460
  %462 = vmatmul.f32.gmra.mxu0 %v251
  %v463 = vpop.f32.mrf.mxu0
  %v464 = vadd.f32 %v86, %v463
  %465 = vmatmul.f32.gmra.mxu0 %v254
  %v466 = vpop.f32.mrf.mxu0
  %v467 = vadd.f32 %v86, %v466
  %468 = vmatmul.f32.gmra.mxu0 %v257
  %v469 = vpop.f32.mrf.mxu0
  %v470 = vadd.f32 %v86, %v469
  %471 = vmatmul.f32.gmra.mxu0 %v260
  %v472 = vpop.f32.mrf.mxu0
  %v473 = vadd.f32 %v86, %v472
  %474 = vmatmul.f32.gmra.mxu0 %v263
  %v475 = vpop.f32.mrf.mxu0
  %v476 = vadd.f32 %v86, %v475
  %477 = vmatmul.f32.gmra.mxu0 %v266
  %v478 = vpop.f32.mrf.mxu0
  %v479 = vadd.f32 %v86, %v478
  %480 = vmatmul.f32.gmra.mxu0 %v269
  %v481 = vpop.f32.mrf.mxu0
  %v482 = vadd.f32 %v86, %v481
  %483 = vmatmul.f32.gmra.mxu0 %v272
  %v484 = vpop.f32.mrf.mxu0
  %v485 = vadd.f32 %v86, %v484
  %486 = vmatmul.f32.gmra.mxu0 %v275
  %v487 = vpop.f32.mrf.mxu0
  %v488 = vadd.f32 %v86, %v487
  %489 = vmatmul.f32.gmra.mxu0 %v278
  %v490 = vpop.f32.mrf.mxu0
  %v491 = vadd.f32 %v86, %v490
  %492 = vdwg.mxu0
  %v493 = vmax.f32 %v302, 0.0
  %v494 = vmax.f32 %v305, 0.0
  %v495 = vmax.f32 %v308, 0.0
  %v496 = vmax.f32 %v311, 0.0
  %v497 = vmax.f32 %v314, 0.0
  %v498 = vmax.f32 %v317, 0.0
  %v499 = vmax.f32 %v320, 0.0
  %v500 = vmax.f32 %v323, 0.0
  %v501 = vmax.f32 %v326, 0.0
  %v502 = vmax.f32 %v329, 0.0
  %v503 = vmax.f32 %v332, 0.0
  %v504 = vmax.f32 %v335, 0.0
  %v505 = vmax.f32 %v338, 0.0
  %v506 = vmax.f32 %v341, 0.0
  %v507 = vmax.f32 %v344, 0.0
  %v508 = vmax.f32 %v347, 0.0
  %v509 = vmax.f32 %v350, 0.0
  %v510 = vmax.f32 %v353, 0.0
  %v511 = vmax.f32 %v356, 0.0
  %v512 = vmax.f32 %v359, 0.0
  %v513 = vmax.f32 %v362, 0.0
  %v514 = vmax.f32 %v365, 0.0
  %v515 = vmax.f32 %v368, 0.0
  %v516 = vmax.f32 %v371, 0.0
  %v517 = vmax.f32 %v374, 0.0
  %v518 = vmax.f32 %v377, 0.0
  %v519 = vmax.f32 %v380, 0.0
  %v520 = vmax.f32 %v383, 0.0
  %v521 = vmax.f32 %v386, 0.0
  %v522 = vmax.f32 %v389, 0.0
  %v523 = vmax.f32 %v392, 0.0
  %v524 = vmax.f32 %v395, 0.0
  %v525 = vmax.f32 %v398, 0.0
  %v526 = vmax.f32 %v401, 0.0
  %v527 = vmax.f32 %v404, 0.0
  %v528 = vmax.f32 %v407, 0.0
  %v529 = vmax.f32 %v410, 0.0
  %v530 = vmax.f32 %v413, 0.0
  %v531 = vmax.f32 %v416, 0.0
  %v532 = vmax.f32 %v419, 0.0
  %v533 = vmax.f32 %v422, 0.0
  %v534 = vmax.f32 %v425, 0.0
  %v535 = vmax.f32 %v428, 0.0
  %v536 = vmax.f32 %v431, 0.0
  %v537 = vmax.f32 %v434, 0.0
  %v538 = vmax.f32 %v437, 0.0
  %v539 = vmax.f32 %v440, 0.0
  %v540 = vmax.f32 %v443, 0.0
  %v541 = vmax.f32 %v446, 0.0
  %v542 = vmax.f32 %v449, 0.0
  %v543 = vmax.f32 %v452, 0.0
  %v544 = vmax.f32 %v455, 0.0
  %v545 = vmax.f32 %v458, 0.0
  %v546 = vmax.f32 %v461, 0.0
  %v547 = vmax.f32 %v464, 0.0
  %v548 = vmax.f32 %v467, 0.0
  %v549 = vmax.f32 %v470, 0.0
  %v550 = vmax.f32 %v473, 0.0
  %v551 = vmax.f32 %v476, 0.0
  %v552 = vmax.f32 %v479, 0.0
  %v553 = vmax.f32 %v482, 0.0
  %v554 = vmax.f32 %v485, 0.0
  %v555 = vmax.f32 %v488, 0.0
  %v556 = vmax.f32 %v491, 0.0
  %v557 = vld [vmem:[%s2] sm:$0xff]
  %559 = vst [vmem:[#allocation1] ss:$4 sm:$0xff] %v557
  %v560 = vld.sshfl [vmem:[#allocation1] sm:$0xff pattern:$0x73625140]
  %v561 = vld.sshfl [vmem:[#allocation1 + $0x8] sm:$0xff pattern:$0x73625140]
  %v562 = vld.sshfl [vmem:[#allocation1 + $0x10] sm:$0xff pattern:$0x73625140]
  %v563 = vld.sshfl [vmem:[#allocation1 + $0x18] sm:$0xff pattern:$0x73625140]
  %568 = vmatpush.msra.mxu0 %v508
  %569 = vmatpush.msra.mxu0 %v507
  %570 = vmatpush.msra.mxu0 %v506
  %571 = vmatpush.msra.mxu0 %v505
  %572 = vmatpush.msra.mxu0 %v504
  %573 = vmatpush.msra.mxu0 %v503
  %574 = vmatpush.msra.mxu0 %v502
  %575 = vmatpush.msra.mxu0 %v501
  %576 = vmatpush.msra.mxu0 %v500
  %577 = vmatpush.msra.mxu0 %v499
  %578 = vmatpush.msra.mxu0 %v498
  %579 = vmatpush.msra.mxu0 %v497
  %580 = vmatpush.msra.mxu0 %v496
  %581 = vmatpush.msra.mxu0 %v495
  %582 = vmatpush.msra.mxu0 %v494
  %583 = vmatpush.msra.mxu0 %v493
  %584 = vmatmul.f32.gmra.mxu0 %v560
  %v585 = vpop.f32.mrf.mxu0
  %v586 = vadd.f32 0.0, %v585
  %587 = vdwg.mxu0
  %588 = vmatpush.msra.mxu0 %v524
  %589 = vmatpush.msra.mxu0 %v523
  %590 = vmatpush.msra.mxu0 %v522
  %591 = vmatpush.msra.mxu0 %v521
  %592 = vmatpush.msra.mxu0 %v520
  %593 = vmatpush.msra.mxu0 %v519
  %594 = vmatpush.msra.mxu0 %v518
  %595 = vmatpush.msra.mxu0 %v517
  %596 = vmatpush.msra.mxu0 %v516
  %597 = vmatpush.msra.mxu0 %v515
  %598 = vmatpush.msra.mxu0 %v514
  %599 = vmatpush.msra.mxu0 %v513
  %600 = vmatpush.msra.mxu0 %v512
  %601 = vmatpush.msra.mxu0 %v511
  %602 = vmatpush.msra.mxu0 %v510
  %603 = vmatpush.msra.mxu0 %v509
  %604 = vmatmul.f32.gmra.mxu0 %v561
  %v605 = vpop.f32.mrf.mxu0
  %v606 = vadd.f32 %v586, %v605
  %607 = vdwg.mxu0
  %608 = vmatpush.msra.mxu0 %v540
  %609 = vmatpush.msra.mxu0 %v539
  %610 = vmatpush.msra.mxu0 %v538
  %611 = vmatpush.msra.mxu0 %v537
  %612 = vmatpush.msra.mxu0 %v536
  %613 = vmatpush.msra.mxu0 %v535
  %614 = vmatpush.msra.mxu0 %v534
  %615 = vmatpush.msra.mxu0 %v533
  %616 = vmatpush.msra.mxu0 %v532
  %617 = vmatpush.msra.mxu0 %v531
  %618 = vmatpush.msra.mxu0 %v530
  %619 = vmatpush.msra.mxu0 %v529
  %620 = vmatpush.msra.mxu0 %v528
  %621 = vmatpush.msra.mxu0 %v527
  %622 = vmatpush.msra.mxu0 %v526
  %623 = vmatpush.msra.mxu0 %v525
  %624 = vmatmul.f32.gmra.mxu0 %v562
  %v625 = vpop.f32.mrf.mxu0
  %v626 = vadd.f32 %v606, %v625
  %627 = vdwg.mxu0
  %628 = vmatpush.msra.mxu0 %v556
  %629 = vmatpush.msra.mxu0 %v555
  %630 = vmatpush.msra.mxu0 %v554
  %631 = vmatpush.msra.mxu0 %v553
  %632 = vmatpush.msra.mxu0 %v552
  %633 = vmatpush.msra.mxu0 %v551
  %634 = vmatpush.msra.mxu0 %v550
  %635 = vmatpush.msra.mxu0 %v549
  %636 = vmatpush.msra.mxu0 %v548
  %637 = vmatpush.msra.mxu0 %v547
  %638 = vmatpush.msra.mxu0 %v546
  %639 = vmatpush.msra.mxu0 %v545
  %640 = vmatpush.msra.mxu0 %v544
  %641 = vmatpush.msra.mxu0 %v543
  %642 = vmatpush.msra.mxu0 %v542
  %643 = vmatpush.msra.mxu0 %v541
  %644 = vmatmul.f32.gmra.mxu0 %v563
  %v645 = vpop.f32.mrf.mxu0
  %v646 = vadd.f32 %v626, %v645
  %647 = vdwg.mxu0
  %v648 = vld [vmem:[%s3] sm:$0xff]
  %v649 = vld [vmem:[%s3 + $0x8] sm:$0xff]
  %v650 = vld [vmem:[%s3 + $0x10] sm:$0xff]
  %v651 = vld [vmem:[%s3 + $0x18] sm:$0xff]
  %v652 = vld [vmem:[%s3 + $0x20] sm:$0x1]
  %v653 = vperm.slane %v652, 0
  %vm654 = vcmask 261120
  %v656 = vsel %vm654, %v646, 0
  %658 = vmatpush.msra.mxu0 0.0
  %659 = vmatpush.msra.mxu0 0.0
  %660 = vmatpush.msra.mxu0 0.0
  %661 = vmatpush.msra.mxu0 0.0
  %662 = vmatpush.msra.mxu0 0.0
  %663 = vmatpush.msra.mxu0 0.0
  %664 = vmatpush.msra.mxu0 0.0
  %665 = vmatpush.msra.mxu0 0.0
  %666 = vmatpush.msra.mxu0 0.0
  %667 = vmatpush.msra.mxu0 0.0
  %668 = vmatpush.msra.mxu0 0.0
  %669 = vmatpush.msra.mxu0 0.0
  %670 = vmatpush.msra.mxu0 %v651
  %671 = vmatpush.msra.mxu0 %v650
  %672 = vmatpush.msra.mxu0 %v649
  %673 = vmatpush.msra.mxu0 %v648
  %674 = vmatmul.f32.gmra.mxu0 %v656
  %v675 = vpop.f32.mrf.mxu0
  %v676 = vadd.f32 %v653, %v675
  %677 = vdwg.mxu0
  %678 = vst [vmem:[%s4] sm:$0x3] %v676
  // Predicated region
  $region18: #{lsnet_forward.1} parent=0 // pred_check
    _
  $region19: #{lsnet_forward.1} parent=0 // pred_check_branch
    %680 = sbr.rel (0) target = $region21
  $region20: #{lsnet_forward.1} parent=0 // pred_region
    _
  $region21: #{lsnet_forward.1} parent=0 // pred_fallthru
    _
  // Predicated region
  $region22: #{lsnet_forward.1} parent=0 // pred_check
    _
  $region23: #{lsnet_forward.1} parent=0 // pred_check_branch
    %682 = sbr.rel (0) target = $region25
  $region24: #{lsnet_forward.1} parent=0 // pred_region
    _
  $region25: #{lsnet_forward.1} parent=0 // pred_fallthru
    _

</llo_original>
